<compile_context>
chip_gen: v7x
topology: tpu7x:2x2x1
jax: 0.10.0
libtpu: 0.0.40
codegen_flags: <defaults>
</compile_context>

<pallas_src>
import functools

import jax
import jax.numpy as jnp
import numpy as np
from jax.experimental import pallas as pl
from jax.experimental.pallas import tpu as pltpu


# ------------------------------- helpers ------------------------------------

def _round_up(n, m):
    return ((n + m - 1) // m) * m


def fold_bn(w, b, gamma, beta, mean, var, eps=1e-5):
    """Fold eval-mode BatchNorm1d into the preceding Linear (y = x@W + b)."""
    s = gamma / jnp.sqrt(var + eps)
    return w * s[None, :], b * s + (beta - mean * s)


# ------------------------------ Pallas kernel -------------------------------

def _resblock_kernel(x_ref, w1_ref, b1_ref, w2_ref, b2_ref, o_ref, *, mm_dtype):
    """Fused:  relu( relu(x@W1 + b1) @ W2 + b2 + x )  for one row tile."""
    x = x_ref[...]                                   # f32 (kept for residual)
    h = jnp.dot(x.astype(mm_dtype), w1_ref[...],
                preferred_element_type=jnp.float32)
    h = jnp.maximum(h + b1_ref[...], 0.0)
    y = jnp.dot(h.astype(mm_dtype), w2_ref[...],
                preferred_element_type=jnp.float32)
    y = y + b2_ref[...] + x
    o_ref[...] = jnp.maximum(y, 0.0)


def res_block_pallas(x, w1, b1, w2, b2, *, use_bf16=False, interpret=False):
    """ResBlock forward (BN already folded into w/b). x: [N, F] float32."""
    N, F = x.shape
    Fp = _round_up(F, 128)                           # lane axis
    n8 = _round_up(N, 8)                             # sublane axis
    # Whole array as one block for small N (no grid-step overhead); otherwise
    # 256-row tiles on a parallel axis (lets v7x shard across both TCs).
    TR = n8 if n8 <= 512 else 256
    Np = _round_up(N, TR)

    mm_dtype = jnp.bfloat16 if use_bf16 else jnp.float32

    # Pad ONCE at the boundary; zero padding is exact for matmul / bias /
    # residual / relu, so a single slice at the end recovers the result.
    xp = jnp.pad(x.astype(jnp.float32), ((0, Np - N), (0, Fp - F)))
    w1p = jnp.pad(w1.astype(mm_dtype), ((0, Fp - F), (0, Fp - F)))
    w2p = jnp.pad(w2.astype(mm_dtype), ((0, Fp - F), (0, Fp - F)))
    b1p = jnp.pad(b1.reshape(1, -1).astype(jnp.float32), ((0, 0), (0, Fp - F)))
    b2p = jnp.pad(b2.reshape(1, -1).astype(jnp.float32), ((0, 0), (0, Fp - F)))

    kernel = functools.partial(_resblock_kernel, mm_dtype=mm_dtype)
    out = pl.pallas_call(
        kernel,
        out_shape=jax.ShapeDtypeStruct((Np, Fp), jnp.float32),
        grid=(Np // TR,),
        in_specs=[
            pl.BlockSpec((TR, Fp), lambda i: (i, 0)),   # x row tile
            pl.BlockSpec((Fp, Fp), lambda i: (0, 0)),   # W1 (grid-invariant)
            pl.BlockSpec((1, Fp), lambda i: (0, 0)),    # b1
            pl.BlockSpec((Fp, Fp), lambda i: (0, 0)),   # W2 (grid-invariant)
            pl.BlockSpec((1, Fp), lambda i: (0, 0)),    # b2
        ],
        out_specs=pl.BlockSpec((TR, Fp), lambda i: (i, 0)),
        compiler_params=pltpu.CompilerParams(
            dimension_semantics=("parallel",)),
        interpret=interpret,
    )(xp, w1p, b1p, w2p, b2p)
    return out[:N, :F]


# --------------------------- module-level wrapper ----------------------------

def init_res_block(key, f):
    k1, k2, k3, k4, k5, k6 = jax.random.split(key, 6)
    scale = jnp.sqrt(2.0 / (f + f))
    params = dict(
        w1=jax.random.normal(k1, (f, f), jnp.float32) * scale,
        b1=jax.random.normal(k2, (f,), jnp.float32) * 0.01,
        w2=jax.random.normal(k3, (f, f), jnp.float32) * scale,
        b2=jax.random.normal(k4, (f,), jnp.float32) * 0.01,
        # non-trivial running stats / affine params so the BN fold is exercised
        bn1=dict(gamma=1.0 + 0.1 * jax.random.normal(k5, (f,), jnp.float32),
                 beta=0.1 * jax.random.normal(k5, (f,), jnp.float32),
                 mean=0.1 * jax.random.normal(k6, (f,), jnp.float32),
                 var=jax.random.uniform(k6, (f,), jnp.float32, 0.5, 1.5)),
        bn2=dict(gamma=1.0 + 0.1 * jax.random.normal(k6, (f,), jnp.float32),
                 beta=0.1 * jax.random.normal(k5, (f,), jnp.float32),
                 mean=0.1 * jax.random.normal(k5, (f,), jnp.float32),
                 var=jax.random.uniform(k5, (f,), jnp.float32, 0.5, 1.5)),
    )
    return params


def res_block(x, params, *, use_bf16=False):
    w1, b1 = fold_bn(params["w1"], params["b1"], **params["bn1"])
    w2, b2 = fold_bn(params["w2"], params["b2"], **params["bn2"])
    return res_block_pallas(x, w1, b1, w2, b2, use_bf16=use_bf16)


def res_block_reference(x, params, eps=1e-5):
    """Pure-JAX eval-mode reference (mirrors the PyTorch forward)."""
    def bn(h, p):
        return (h - p["mean"]) / jnp.sqrt(p["var"] + eps) * p["gamma"] + p["beta"]
    h = jnp.maximum(bn(x @ params["w1"] + params["b1"], params["bn1"]), 0.0)
    y = bn(h @ params["w2"] + params["b2"], params["bn2"]) + x
    return jnp.maximum(y, 0.0)


# ----------------------------------- main ------------------------------------

if __name__ == "__main__":
    key = jax.random.PRNGKey(0)
    N, F = 30, 64                                     # small: 30 rows, 64 features
    kx, kp = jax.random.split(key)
    x = jax.random.normal(kx, (N, F), jnp.float32)
    params = init_res_block(kp, F)

    out = res_block(x, params)                        # fused Pallas forward (f32 MXU)
    jax.block_until_ready(out)

    ref = res_block_reference(x, params)
    np.testing.assert_allclose(np.asarray(out), np.asarray(ref),
                               rtol=1e-2, atol=1e-2)

    # bf16-matmul variant (v6e / v7x fast path) — just make sure it runs.
    out_bf16 = res_block(x, params, use_bf16=True)
    jax.block_until_ready(out_bf16)

    print("KERNEL_OK")
</pallas_src>

<mosaic_0001>
module attributes {stable_mosaic.version = 11 : i64} {
  func.func @_resblock_kernel(%arg0: i32, %arg1: memref<32x128xf32, #tpu.memory_space<vmem>>, %arg2: memref<128x128xf32, #tpu.memory_space<vmem>>, %arg3: memref<1x128xf32, #tpu.memory_space<vmem>>, %arg4: memref<128x128xf32, #tpu.memory_space<vmem>>, %arg5: memref<1x128xf32, #tpu.memory_space<vmem>>, %arg6: memref<32x128xf32, #tpu.memory_space<vmem>>) attributes {dimension_semantics = [#tpu.dimension_semantics<parallel>], iteration_bounds = array<i64: 1>, scalar_prefetch = 0 : i64, scratch_operands = 0 : i64, tpu.core_type = #tpu.core_type<tc>, window_params = [{transform_indices = @transform_0, window_bounds = array<i64: 32, 128>}, {pipeline_mode = #tpu.pipeline_mode<synchronous>, transform_indices = @transform_1, window_bounds = array<i64: 128, 128>}, {pipeline_mode = #tpu.pipeline_mode<synchronous>, transform_indices = @transform_2, window_bounds = array<i64: 1, 128>}, {pipeline_mode = #tpu.pipeline_mode<synchronous>, transform_indices = @transform_3, window_bounds = array<i64: 128, 128>}, {pipeline_mode = #tpu.pipeline_mode<synchronous>, transform_indices = @transform_4, window_bounds = array<i64: 1, 128>}, {transform_indices = @transform_5, window_bounds = array<i64: 32, 128>}]} {
    %c0 = arith.constant 0 : index
    %c0_0 = arith.constant 0 : index
    %0 = vector.load %arg1[%c0, %c0_0] : memref<32x128xf32, #tpu.memory_space<vmem>>, vector<32x128xf32>
    %c0_1 = arith.constant 0 : index
    %c0_2 = arith.constant 0 : index
    %1 = vector.load %arg2[%c0_1, %c0_2] : memref<128x128xf32, #tpu.memory_space<vmem>>, vector<128x128xf32>
    %cst = arith.constant dense<0.000000e+00> : vector<32x128xf32>
    %2 = tpu.matmul %0, %1, %cst {dimension_numbers = #tpu.dot_dimension_numbers<[1], [0], [0], [1], [0, 0, 1, 1], [], []>} : vector<32x128xf32>, vector<128x128xf32>, vector<32x128xf32> -> vector<32x128xf32>
    %c0_3 = arith.constant 0 : index
    %c0_4 = arith.constant 0 : index
    %3 = vector.load %arg3[%c0_3, %c0_4] : memref<1x128xf32, #tpu.memory_space<vmem>>, vector<1x128xf32>
    %4 = vector.broadcast %3 : vector<1x128xf32> to vector<32x128xf32>
    %5 = arith.addf %2, %4 : vector<32x128xf32>
    %cst_5 = arith.constant 0.000000e+00 : f32
    %6 = vector.broadcast %cst_5 : f32 to vector<32x128xf32>
    %7 = arith.maximumf %5, %6 : vector<32x128xf32>
    %c0_6 = arith.constant 0 : index
    %c0_7 = arith.constant 0 : index
    %8 = vector.load %arg4[%c0_6, %c0_7] : memref<128x128xf32, #tpu.memory_space<vmem>>, vector<128x128xf32>
    %cst_8 = arith.constant dense<0.000000e+00> : vector<32x128xf32>
    %9 = tpu.matmul %7, %8, %cst_8 {dimension_numbers = #tpu.dot_dimension_numbers<[1], [0], [0], [1], [0, 0, 1, 1], [], []>} : vector<32x128xf32>, vector<128x128xf32>, vector<32x128xf32> -> vector<32x128xf32>
    %c0_9 = arith.constant 0 : index
    %c0_10 = arith.constant 0 : index
    %10 = vector.load %arg5[%c0_9, %c0_10] : memref<1x128xf32, #tpu.memory_space<vmem>>, vector<1x128xf32>
    %11 = vector.broadcast %10 : vector<1x128xf32> to vector<32x128xf32>
    %12 = arith.addf %9, %11 : vector<32x128xf32>
    %13 = arith.addf %12, %0 : vector<32x128xf32>
    %cst_11 = arith.constant 0.000000e+00 : f32
    %14 = vector.broadcast %cst_11 : f32 to vector<32x128xf32>
    %15 = arith.maximumf %13, %14 : vector<32x128xf32>
    %c0_12 = arith.constant 0 : index
    %c0_13 = arith.constant 0 : index
    %16 = vector.load %arg6[%c0_12, %c0_13] : memref<32x128xf32, #tpu.memory_space<vmem>>, vector<32x128xf32>
    tpu.vector_store %arg6[%c0_12, %c0_13], %15 {strides = array<i32>} : memref<32x128xf32, #tpu.memory_space<vmem>>, vector<32x128xf32>,
    return
  }
  func.func @transform_0(%arg0: i32) -> (i32, i32) {
    %c0_i32 = arith.constant 0 : i32
    %c0_i32_0 = arith.constant 0 : i32
    return %arg0, %c0_i32 : i32, i32
  }
  func.func @transform_1(%arg0: i32) -> (i32, i32) {
    %c0_i32 = arith.constant 0 : i32
    %c0_i32_0 = arith.constant 0 : i32
    %c0_i32_1 = arith.constant 0 : i32
    return %c0_i32, %c0_i32_0 : i32, i32
  }
  func.func @transform_2(%arg0: i32) -> (i32, i32) {
    %c0_i32 = arith.constant 0 : i32
    %c0_i32_0 = arith.constant 0 : i32
    %c0_i32_1 = arith.constant 0 : i32
    return %c0_i32, %c0_i32_0 : i32, i32
  }
  func.func @transform_3(%arg0: i32) -> (i32, i32) {
    %c0_i32 = arith.constant 0 : i32
    %c0_i32_0 = arith.constant 0 : i32
    %c0_i32_1 = arith.constant 0 : i32
    return %c0_i32, %c0_i32_0 : i32, i32
  }
  func.func @transform_4(%arg0: i32) -> (i32, i32) {
    %c0_i32 = arith.constant 0 : i32
    %c0_i32_0 = arith.constant 0 : i32
    %c0_i32_1 = arith.constant 0 : i32
    return %c0_i32, %c0_i32_0 : i32, i32
  }
  func.func @transform_5(%arg0: i32) -> (i32, i32) {
    %c0_i32 = arith.constant 0 : i32
    %c0_i32_0 = arith.constant 0 : i32
    return %arg0, %c0_i32 : i32, i32
  }
}

</mosaic_0001>

<llo_original>
// kernel: tpu_custom_call.1
$region0: #{tpu_custom_call.1}
  #allocation0 [shape = 'u32[]', space=smem, size = 0x4, offset = 0x4, fixed_abs, tag = 'smem constant byte address 0x4 - core index']
  #allocation1 [shape = 'u32[144,128]{1,0:T(1,128)}', space=vmem, size = 0x12000, scoped, tag = 'internal scratch']
  %s0 = inlined_call_operand.hbm [shape: f32[32,128], index: 0, kind: input, shape index: {}]
  %s1 = inlined_call_operand.hbm [shape: f32[128,128], index: 1, kind: input, shape index: {}]
  %s2 = inlined_call_operand.vmem [shape: f32[1,128], index: 2, kind: input, shape index: {}]
  %s3 = inlined_call_operand.hbm [shape: f32[128,128], index: 3, kind: input, shape index: {}]
  %s4 = inlined_call_operand.vmem [shape: f32[1,128], index: 4, kind: input, shape index: {}]
  %s5 = inlined_call_operand.hbm [shape: f32[32,128], index: 5, kind: output, shape index: {}]
  %s6 = sld [smem:[#allocation0]]
  $region42: #{tpu_custom_call.1} parent=0
    _
  %s8 = ssub.s32 1, %s6
  %s9 = scalar_select 0, %s8, %s6
  $region1: #{tpu_custom_call.1} parent=0
    #allocation2 [shape = 'u8[16384]{0}', space=vmem, size = 0x4000, scoped, tag = 'input window, operand 0, single buffered']
    #allocation3 [shape = 's32[1]{0}', space=sflag, size = 0x4, scoped, tag = 'scoped memory for tpu_custom_call.1']
    #allocation4 [shape = 's32[1]{0}', space=sflag, size = 0x4, scoped, tag = 'scoped memory for tpu_custom_call.1']
    #allocation5 [shape = 'u8[65536]{0}', space=vmem, size = 0x10000, scoped, tag = 'input window, operand 1, single buffered']
    #allocation6 [shape = 's32[1]{0}', space=sflag, size = 0x4, scoped, tag = 'scoped memory for tpu_custom_call.1']
    #allocation7 [shape = 'u8[65536]{0}', space=vmem, size = 0x10000, scoped, tag = 'input window, operand 3, single buffered']
    #allocation8 [shape = 'u8[16384]{0}', space=vmem, size = 0x4000, scoped, tag = 'output window, operand 0, single buffered']
    %10 = vsyncpa [#allocation3], 0
    %11 = vsyncpa [#allocation6], 0
    %12 = vsyncpa [#allocation4], 0
    // Predicated region
    $region2: #{tpu_custom_call.1} parent=1 // pred_check
      _
    $region3: #{tpu_custom_call.1} parent=1 // pred_check_branch
      %14 = sbr.rel (0) target = $region5
    $region4: #{tpu_custom_call.1} parent=1 // pred_region
      %s16 = ssub.s32 512, 512
      %17 = vsyncadd [#allocation3], %s16
      %s18 = sshll.u32 [#allocation2], 4
      %s19 = int_to_ptr.vmem [resolvable:$true] %s18
      %24 = dma.hbm_to_vmem [thread:$0]  %s0, 512, %s19, [#allocation3], 128, 128, 8
    $region5: #{tpu_custom_call.1} parent=1 // pred_fallthru
      _
    // Predicated region
    $region6: #{tpu_custom_call.1} parent=1 // pred_check
      _
    $region7: #{tpu_custom_call.1} parent=1 // pred_check_branch
      %26 = sbr.rel (0) target = $region9
    $region8: #{tpu_custom_call.1} parent=1 // pred_region
      %s28 = ssub.s32 2048, 2048
      %29 = vsyncadd [#allocation6], %s28
      %s30 = sshll.u32 [#allocation5], 4
      %s31 = int_to_ptr.vmem [resolvable:$true] %s30
      %36 = dma.hbm_to_vmem [thread:$0]  %s1, 2048, %s31, [#allocation6], 128, 128, 8
    $region9: #{tpu_custom_call.1} parent=1 // pred_fallthru
      _
    // Predicated region
    $region10: #{tpu_custom_call.1} parent=1 // pred_check
      _
    $region11: #{tpu_custom_call.1} parent=1 // pred_check_branch
      %38 = sbr.rel (0) target = $region13
    $region12: #{tpu_custom_call.1} parent=1 // pred_region
      _
    $region13: #{tpu_custom_call.1} parent=1 // pred_fallthru
      _
    // Predicated region
    $region14: #{tpu_custom_call.1} parent=1 // pred_check
      _
    $region15: #{tpu_custom_call.1} parent=1 // pred_check_branch
      %40 = sbr.rel (0) target = $region17
    $region16: #{tpu_custom_call.1} parent=1 // pred_region
      %s42 = ssub.s32 2048, 2048
      %43 = vsyncadd [#allocation6], %s42
      %s44 = sshll.u32 [#allocation7], 4
      %s45 = int_to_ptr.vmem [resolvable:$true] %s44
      %50 = dma.hbm_to_vmem [thread:$0]  %s3, 2048, %s45, [#allocation6], 128, 128, 8
    $region17: #{tpu_custom_call.1} parent=1 // pred_fallthru
      _
    // Predicated region
    $region18: #{tpu_custom_call.1} parent=1 // pred_check
      _
    $region19: #{tpu_custom_call.1} parent=1 // pred_check_branch
      %52 = sbr.rel (0) target = $region21
    $region20: #{tpu_custom_call.1} parent=1 // pred_region
      _
    $region21: #{tpu_custom_call.1} parent=1 // pred_fallthru
      _
    // Predicated region
    $region22: #{tpu_custom_call.1} parent=1 // pred_check
      _
    $region23: #{tpu_custom_call.1} parent=1 // pred_check_branch
      %54 = sbr.rel (0) target = $region25
    $region24: #{tpu_custom_call.1} parent=1 // pred_region
      %55 = dma.done [#allocation3], 512
    $region25: #{tpu_custom_call.1} parent=1 // pred_fallthru
      _
    // Predicated region
    $region26: #{tpu_custom_call.1} parent=1 // pred_check
      _
    $region27: #{tpu_custom_call.1} parent=1 // pred_check_branch
      %57 = sbr.rel (0) target = $region29
    $region28: #{tpu_custom_call.1} parent=1 // pred_region
      %58 = dma.done [#allocation6], 2048
    $region29: #{tpu_custom_call.1} parent=1 // pred_fallthru
      _
    // Predicated region
    $region30: #{tpu_custom_call.1} parent=1 // pred_check
      _
    $region31: #{tpu_custom_call.1} parent=1 // pred_check_branch
      %60 = sbr.rel (0) target = $region33
    $region32: #{tpu_custom_call.1} parent=1 // pred_region
      %61 = dma.done [#allocation6], 2048
    $region33: #{tpu_custom_call.1} parent=1 // pred_fallthru
      _
    %v62 = vld [vmem:[#allocation2] sm:$0xff]
    %v63 = vld [vmem:[#allocation2 + $0x8] sm:$0xff]
    %v64 = vld [vmem:[#allocation2 + $0x10] sm:$0xff]
    %v65 = vld [vmem:[#allocation2 + $0x18] sm:$0xff]
    %v66 = vld [vmem:[#allocation5] sm:$0xff]
    %v67 = vld [vmem:[#allocation5 + $0x8] sm:$0xff]
    %v68 = vld [vmem:[#allocation5 + $0x10] sm:$0xff]
    %v69 = vld [vmem:[#allocation5 + $0x18] sm:$0xff]
    %v70 = vld [vmem:[#allocation5 + $0x20] sm:$0xff]
    %v71 = vld [vmem:[#allocation5 + $0x28] sm:$0xff]
    %v72 = vld [vmem:[#allocation5 + $0x30] sm:$0xff]
    %v73 = vld [vmem:[#allocation5 + $0x38] sm:$0xff]
    %v74 = vld [vmem:[#allocation5 + $0x40] sm:$0xff]
    %v75 = vld [vmem:[#allocation5 + $0x48] sm:$0xff]
    %v76 = vld [vmem:[#allocation5 + $0x50] sm:$0xff]
    %v77 = vld [vmem:[#allocation5 + $0x58] sm:$0xff]
    %v78 = vld [vmem:[#allocation5 + $0x60] sm:$0xff]
    %v79 = vld [vmem:[#allocation5 + $0x68] sm:$0xff]
    %v80 = vld [vmem:[#allocation5 + $0x70] sm:$0xff]
    %v81 = vld [vmem:[#allocation5 + $0x78] sm:$0xff]
    %v82 = vld [vmem:[%s2] sm:$0x1]
    %v84 = vlaneseq
    %v85 = vshrl.u32 %v84, 7
    %v86 = vsub.s32 0, %v85
    %v87 = vrot.slane %v82, %v86
    %89 = vmatprep.subr.mxu0 0.0
    %90 = vmatpush1.msra.mxu0 %v66
    %91 = vmatprep.subr.mxu0 0.0
    %92 = vmatpush1.msra.mxu0 %v67
    %93 = vmatprep.subr.mxu0 0.0
    %94 = vmatpush1.msra.mxu0 %v68
    %95 = vmatprep.subr.mxu0 0.0
    %96 = vmatpush1.msra.mxu0 %v69
    %97 = vmatprep.subr.mxu0 0.0
    %98 = vmatpush1.msra.mxu0 %v70
    %99 = vmatprep.subr.mxu0 0.0
    %100 = vmatpush1.msra.mxu0 %v71
    %101 = vmatprep.subr.mxu0 0.0
    %102 = vmatpush1.msra.mxu0 %v72
    %103 = vmatprep.subr.mxu0 0.0
    %104 = vmatpush1.msra.mxu0 %v73
    %105 = vmatprep.subr.mxu0 0.0
    %106 = vmatpush1.msra.mxu0 %v74
    %107 = vmatprep.subr.mxu0 0.0
    %108 = vmatpush1.msra.mxu0 %v75
    %109 = vmatprep.subr.mxu0 0.0
    %110 = vmatpush1.msra.mxu0 %v76
    %111 = vmatprep.subr.mxu0 0.0
    %112 = vmatpush1.msra.mxu0 %v77
    %113 = vmatprep.subr.mxu0 0.0
    %114 = vmatpush1.msra.mxu0 %v78
    %115 = vmatprep.subr.mxu0 0.0
    %116 = vmatpush1.msra.mxu0 %v79
    %117 = vmatprep.subr.mxu0 0.0
    %118 = vmatpush1.msra.mxu0 %v80
    %119 = vmatprep.subr.mxu0 0.0
    %120 = vmatpush1.msra.mxu0 %v81
    %121 = vmatprep.subr.mxu0 0.0
    %122 = vmatpush1.msra.mxu0 0.0
    %123 = vmatprep.subr.mxu0 0.0
    %124 = vmatpush1.msra.mxu0 0.0
    %125 = vmatprep.subr.mxu0 0.0
    %126 = vmatpush1.msra.mxu0 0.0
    %127 = vmatprep.subr.mxu0 0.0
    %128 = vmatpush1.msra.mxu0 0.0
    %129 = vmatprep.subr.mxu0 0.0
    %130 = vmatpush1.msra.mxu0 0.0
    %131 = vmatprep.subr.mxu0 0.0
    %132 = vmatpush1.msra.mxu0 0.0
    %133 = vmatprep.subr.mxu0 0.0
    %134 = vmatpush1.msra.mxu0 0.0
    %135 = vmatprep.subr.mxu0 0.0
    %136 = vmatpush1.msra.mxu0 0.0
    %137 = vmatprep.subr.mxu0 0.0
    %138 = vmatpush1.msra.mxu0 0.0
    %139 = vmatprep.subr.mxu0 0.0
    %140 = vmatpush1.msra.mxu0 0.0
    %141 = vmatprep.subr.mxu0 0.0
    %142 = vmatpush1.msra.mxu0 0.0
    %143 = vmatprep.subr.mxu0 0.0
    %144 = vmatpush1.msra.mxu0 0.0
    %145 = vmatprep.subr.mxu0 0.0
    %146 = vmatpush1.msra.mxu0 0.0
    %147 = vmatprep.subr.mxu0 0.0
    %148 = vmatpush1.msra.mxu0 0.0
    %149 = vmatprep.subr.mxu0 0.0
    %150 = vmatpush1.msra.mxu0 0.0
    %151 = vmatprep.subr.mxu0 0.0
    %152 = vmatpush1.msra.mxu0 0.0
    %153 = vmatprep.mubr.f32.mxu0 0.0
    %154 = vmatmul.mubr.f32.gmra.mrb[0].mxu0 %v62
    %v155 = vpop.f32.mrb[0].mxu0
    %v156 = vadd.f32 %v87, %v155
    %v157 = vpop.f32.mrb[0].mxu0
    %158 = vmatprep.mubr.f32.mxu0 0.0
    %159 = vmatmul.mubr.f32.gmra.mrb[0].mxu0 %v63
    %v160 = vpop.f32.mrb[0].mxu0
    %v161 = vadd.f32 %v87, %v160
    %v162 = vpop.f32.mrb[0].mxu0
    %163 = vmatprep.mubr.f32.mxu0 0.0
    %164 = vmatmul.mubr.f32.gmra.mrb[0].mxu0 %v64
    %v165 = vpop.f32.mrb[0].mxu0
    %v166 = vadd.f32 %v87, %v165
    %v167 = vpop.f32.mrb[0].mxu0
    %168 = vmatprep.mubr.f32.mxu0 0.0
    %169 = vmatmul.mubr.f32.gmra.mrb[0].mxu0 %v65
    %v170 = vpop.f32.mrb[0].mxu0
    %v171 = vadd.f32 %v87, %v170
    %v172 = vpop.f32.mrb[0].mxu0
    %173 = vdwg.mxu0
    %v174 = vmax.f32 %v156, 0.0
    %v175 = vmax.f32 %v161, 0.0
    %v176 = vmax.f32 %v166, 0.0
    %v177 = vmax.f32 %v171, 0.0
    %v178 = vld [vmem:[#allocation7] sm:$0xff]
    %v179 = vld [vmem:[#allocation7 + $0x8] sm:$0xff]
    %v180 = vld [vmem:[#allocation7 + $0x10] sm:$0xff]
    %v181 = vld [vmem:[#allocation7 + $0x18] sm:$0xff]
    %v182 = vld [vmem:[#allocation7 + $0x20] sm:$0xff]
    %v183 = vld [vmem:[#allocation7 + $0x28] sm:$0xff]
    %v184 = vld [vmem:[#allocation7 + $0x30] sm:$0xff]
    %v185 = vld [vmem:[#allocation7 + $0x38] sm:$0xff]
    %v186 = vld [vmem:[#allocation7 + $0x40] sm:$0xff]
    %v187 = vld [vmem:[#allocation7 + $0x48] sm:$0xff]
    %v188 = vld [vmem:[#allocation7 + $0x50] sm:$0xff]
    %v189 = vld [vmem:[#allocation7 + $0x58] sm:$0xff]
    %v190 = vld [vmem:[#allocation7 + $0x60] sm:$0xff]
    %v191 = vld [vmem:[#allocation7 + $0x68] sm:$0xff]
    %v192 = vld [vmem:[#allocation7 + $0x70] sm:$0xff]
    %v193 = vld [vmem:[#allocation7 + $0x78] sm:$0xff]
    %v194 = vld [vmem:[%s4] sm:$0x1]
    %v196 = vlaneseq
    %v197 = vshrl.u32 %v196, 7
    %v198 = vsub.s32 0, %v197
    %v199 = vrot.slane %v194, %v198
    %201 = vmatprep.subr.mxu0 0.0
    %202 = vmatpush1.msra.mxu0 %v178
    %203 = vmatprep.subr.mxu0 0.0
    %204 = vmatpush1.msra.mxu0 %v179
    %205 = vmatprep.subr.mxu0 0.0
    %206 = vmatpush1.msra.mxu0 %v180
    %207 = vmatprep.subr.mxu0 0.0
    %208 = vmatpush1.msra.mxu0 %v181
    %209 = vmatprep.subr.mxu0 0.0
    %210 = vmatpush1.msra.mxu0 %v182
    %211 = vmatprep.subr.mxu0 0.0
    %212 = vmatpush1.msra.mxu0 %v183
    %213 = vmatprep.subr.mxu0 0.0
    %214 = vmatpush1.msra.mxu0 %v184
    %215 = vmatprep.subr.mxu0 0.0
    %216 = vmatpush1.msra.mxu0 %v185
    %217 = vmatprep.subr.mxu0 0.0
    %218 = vmatpush1.msra.mxu0 %v186
    %219 = vmatprep.subr.mxu0 0.0
    %220 = vmatpush1.msra.mxu0 %v187
    %221 = vmatprep.subr.mxu0 0.0
    %222 = vmatpush1.msra.mxu0 %v188
    %223 = vmatprep.subr.mxu0 0.0
    %224 = vmatpush1.msra.mxu0 %v189
    %225 = vmatprep.subr.mxu0 0.0
    %226 = vmatpush1.msra.mxu0 %v190
    %227 = vmatprep.subr.mxu0 0.0
    %228 = vmatpush1.msra.mxu0 %v191
    %229 = vmatprep.subr.mxu0 0.0
    %230 = vmatpush1.msra.mxu0 %v192
    %231 = vmatprep.subr.mxu0 0.0
    %232 = vmatpush1.msra.mxu0 %v193
    %233 = vmatprep.subr.mxu0 0.0
    %234 = vmatpush1.msra.mxu0 0.0
    %235 = vmatprep.subr.mxu0 0.0
    %236 = vmatpush1.msra.mxu0 0.0
    %237 = vmatprep.subr.mxu0 0.0
    %238 = vmatpush1.msra.mxu0 0.0
    %239 = vmatprep.subr.mxu0 0.0
    %240 = vmatpush1.msra.mxu0 0.0
    %241 = vmatprep.subr.mxu0 0.0
    %242 = vmatpush1.msra.mxu0 0.0
    %243 = vmatprep.subr.mxu0 0.0
    %244 = vmatpush1.msra.mxu0 0.0
    %245 = vmatprep.subr.mxu0 0.0
    %246 = vmatpush1.msra.mxu0 0.0
    %247 = vmatprep.subr.mxu0 0.0
    %248 = vmatpush1.msra.mxu0 0.0
    %249 = vmatprep.subr.mxu0 0.0
    %250 = vmatpush1.msra.mxu0 0.0
    %251 = vmatprep.subr.mxu0 0.0
    %252 = vmatpush1.msra.mxu0 0.0
    %253 = vmatprep.subr.mxu0 0.0
    %254 = vmatpush1.msra.mxu0 0.0
    %255 = vmatprep.subr.mxu0 0.0
    %256 = vmatpush1.msra.mxu0 0.0
    %257 = vmatprep.subr.mxu0 0.0
    %258 = vmatpush1.msra.mxu0 0.0
    %259 = vmatprep.subr.mxu0 0.0
    %260 = vmatpush1.msra.mxu0 0.0
    %261 = vmatprep.subr.mxu0 0.0
    %262 = vmatpush1.msra.mxu0 0.0
    %263 = vmatprep.subr.mxu0 0.0
    %264 = vmatpush1.msra.mxu0 0.0
    %265 = vmatprep.mubr.f32.mxu0 0.0
    %266 = vmatmul.mubr.f32.gmra.mrb[0].mxu0 %v174
    %v267 = vpop.f32.mrb[0].mxu0
    %v268 = vadd.f32 %v199, %v267
    %v269 = vpop.f32.mrb[0].mxu0
    %270 = vmatprep.mubr.f32.mxu0 0.0
    %271 = vmatmul.mubr.f32.gmra.mrb[0].mxu0 %v175
    %v272 = vpop.f32.mrb[0].mxu0
    %v273 = vadd.f32 %v199, %v272
    %v274 = vpop.f32.mrb[0].mxu0
    %275 = vmatprep.mubr.f32.mxu0 0.0
    %276 = vmatmul.mubr.f32.gmra.mrb[0].mxu0 %v176
    %v277 = vpop.f32.mrb[0].mxu0
    %v278 = vadd.f32 %v199, %v277
    %v279 = vpop.f32.mrb[0].mxu0
    %280 = vmatprep.mubr.f32.mxu0 0.0
    %281 = vmatmul.mubr.f32.gmra.mrb[0].mxu0 %v177
    %v282 = vpop.f32.mrb[0].mxu0
    %v283 = vadd.f32 %v199, %v282
    %v284 = vpop.f32.mrb[0].mxu0
    %285 = vdwg.mxu0
    %v286 = vadd.f32 %v268, %v62
    %v287 = vadd.f32 %v273, %v63
    %v288 = vadd.f32 %v278, %v64
    %v289 = vadd.f32 %v283, %v65
    %v290 = vmax.f32 %v286, 0.0
    %v291 = vmax.f32 %v287, 0.0
    %v292 = vmax.f32 %v288, 0.0
    %v293 = vmax.f32 %v289, 0.0
    %294 = vst [vmem:[#allocation8] sm:$0xff] %v290
    %295 = vst [vmem:[#allocation8 + $0x8] sm:$0xff] %v291
    %296 = vst [vmem:[#allocation8 + $0x10] sm:$0xff] %v292
    %297 = vst [vmem:[#allocation8 + $0x18] sm:$0xff] %v293
    // Predicated region
    $region34: #{tpu_custom_call.1} parent=1 // pred_check
      _
    $region35: #{tpu_custom_call.1} parent=1 // pred_check_branch
      %299 = sbr.rel (0) target = $region37
    $region36: #{tpu_custom_call.1} parent=1 // pred_region
      %s301 = ssub.s32 512, 512
      %302 = vsyncadd [#allocation4], %s301
      %s303 = sshll.u32 [#allocation8], 4
      %s304 = int_to_ptr.vmem [resolvable:$true] %s303
      %309 = dma.vmem_to_hbm [thread:$0]  %s304, 512, %s5, [#allocation4], 128, 128, 8
    $region37: #{tpu_custom_call.1} parent=1 // pred_fallthru
      _
    // Predicated region
    $region38: #{tpu_custom_call.1} parent=1 // pred_check
      _
    $region39: #{tpu_custom_call.1} parent=1 // pred_check_branch
      %311 = sbr.rel (0) target = $region41
    $region40: #{tpu_custom_call.1} parent=1 // pred_region
      %312 = dma.done [#allocation4], 512
    $region41: #{tpu_custom_call.1} parent=1 // pred_fallthru
      _
    %313 = vsyncpa [#allocation3], 1
    %314 = vsyncpa [#allocation6], 1
    %315 = vsyncpa [#allocation4], 1

</llo_original>
